<compile_context>
chip_gen: v7x
topology: tpu7x:2x2x1
jax: 0.10.0
libtpu: 0.0.40
codegen_flags: <defaults>
</compile_context>

<pallas_src>
import functools

import jax
import jax.numpy as jnp
from jax.experimental import pallas as pl
from jax.experimental.pallas import tpu as pltpu


# ------------------------------ Pallas kernel ------------------------------- #

def gcn_forward_kernel(a_ref, x_ref,
                       w0_ref, b0_ref, w1_ref, b1_ref,
                       w2_ref, b2_ref, w3_ref, b3_ref,
                       maskmax_ref, maskmean_ref,
                       wmax_ref, wmean_ref, bout_ref,
                       o_ref, *, num_graphs):
    # a_ref: (N, N), x_ref: (N, F), wK: (Fin, E), bK: (1, E)
    # maskmax_ref: (N, B) one-hot, maskmean_ref: (B, N) count-normalized
    # wmax/wmean: (E, 1), bout: (1, 1), o_ref: (B, 128) lane-dense output
    a = a_ref[...]                                   # loaded once, reused 4x

    def layer(h, w_ref, b_ref):
        hw = jnp.dot(h, w_ref[...], preferred_element_type=jnp.float32)
        hh = jnp.dot(a, hw, preferred_element_type=jnp.float32) + b_ref[...]
        return jnp.tanh(hh)                          # EUP tanh, f32 throughout

    h = layer(x_ref[...], w0_ref, b0_ref)            # initial_conv + tanh
    h = layer(h, w1_ref, b1_ref)                     # conv1 + tanh
    h = layer(h, w2_ref, b2_ref)                     # conv2 + tanh
    h = layer(h, w3_ref, b3_ref)                     # conv3 + tanh

    # --- global max pool (per-graph masked max; B is tiny, static unroll) ---
    neg = jnp.float32(-1e30)
    max_rows = []
    for g in range(num_graphs):
        m = maskmax_ref[:, g:g + 1]                                  # (N, 1)
        max_rows.append(jnp.max(jnp.where(m > 0, h, neg),
                                axis=0, keepdims=True))              # (1, E)
    pooled_max = jnp.concatenate(max_rows, axis=0)                   # (B, E)

    # --- global mean pool as a single MXU matmul (mask pre-normalized) ---
    pooled_mean = jnp.dot(maskmean_ref[...], h,
                          preferred_element_type=jnp.float32)        # (B, E)

    # --- final Linear: one batched dot, one lane-dense store ---
    out = (jnp.dot(pooled_max, wmax_ref[...], preferred_element_type=jnp.float32)
           + jnp.dot(pooled_mean, wmean_ref[...], preferred_element_type=jnp.float32)
           + bout_ref[...])                                          # (B, 1)
    o_ref[...] = jnp.broadcast_to(out, o_ref.shape)                  # (B, 128)


# ------------------------------- Wrapper ------------------------------------ #

_VMEM = pl.BlockSpec(memory_space=pltpu.MemorySpace.VMEM)
_OUT_LANES = 128  # lane-dense output; wrapper slices [:, :1]


def gcn_net_forward(params, x, edge_index, batch_index, num_graphs):
    n = x.shape[0]
    e = params["w0"].shape[1]

    a_hat = normalized_adjacency(edge_index, n)

    # (B, N) one-hot membership mask; normalized copy for matmul mean-pool.
    mask_bn = (batch_index[None, :] == jnp.arange(num_graphs)[:, None]).astype(jnp.float32)
    cnt = jnp.maximum(jnp.sum(mask_bn, axis=1, keepdims=True), 1.0)  # avoid /0
    mask_mean = mask_bn / cnt                                        # (B, N)
    mask_max = mask_bn.T                                             # (N, B)

    w_out = params["w_out"]
    w_max, w_mean = w_out[:e, :], w_out[e:, :]                       # (E,1) each

    out_padded = pl.pallas_call(
        functools.partial(gcn_forward_kernel, num_graphs=num_graphs),
        out_shape=jax.ShapeDtypeStruct((num_graphs, _OUT_LANES), jnp.float32),
        in_specs=[_VMEM] * 15,
        out_specs=_VMEM,
    )(a_hat, x.astype(jnp.float32),
      params["w0"], params["b0"].reshape(1, -1),
      params["w1"], params["b1"].reshape(1, -1),
      params["w2"], params["b2"].reshape(1, -1),
      params["w3"], params["b3"].reshape(1, -1),
      mask_max, mask_mean,
      w_max, w_mean, params["b_out"].reshape(1, 1))

    return out_padded[:, :1]                                         # (B, 1)


# --------------------------- Graph preprocessing ---------------------------- #

def normalized_adjacency(edge_index, num_nodes):
    # PyG gcn_norm semantics: add_remaining_self_loops (only nodes lacking a
    # self-loop get one), then A_hat = D^-1/2 A D^-1/2 with in-degree D.
    src, dst = edge_index[0], edge_index[1]
    a = jnp.zeros((num_nodes, num_nodes), jnp.float32).at[dst, src].add(1.0)
    diag = jnp.diagonal(a)
    a = a + jnp.diag(jnp.where(diag > 0, 0.0, 1.0))
    deg = jnp.sum(a, axis=1)
    d_inv_sqrt = jnp.where(deg > 0, jax.lax.rsqrt(deg), 0.0)
    return d_inv_sqrt[:, None] * a * d_inv_sqrt[None, :]


# ---------------------------------- Main ------------------------------------ #

if __name__ == "__main__":
    # Small synthetic problem consistent with the module:
    #   N nodes, F input features, E=embedding_size, B graphs in the batch.
    N, F_IN, EMB, B = 16, 8, 32, 2
    NUM_EDGES = 40

    key = jax.random.PRNGKey(0)
    keys = jax.random.split(key, 16)

    # Deterministic parameters (synthetic init, no checkpoint).
    params = {
        "w0": 0.1 * jax.random.normal(keys[0], (F_IN, EMB), jnp.float32),
        "b0": 0.1 * jax.random.normal(keys[1], (EMB,), jnp.float32),
        "w1": 0.1 * jax.random.normal(keys[2], (EMB, EMB), jnp.float32),
        "b1": 0.1 * jax.random.normal(keys[3], (EMB,), jnp.float32),
        "w2": 0.1 * jax.random.normal(keys[4], (EMB, EMB), jnp.float32),
        "b2": 0.1 * jax.random.normal(keys[5], (EMB,), jnp.float32),
        "w3": 0.1 * jax.random.normal(keys[6], (EMB, EMB), jnp.float32),
        "b3": 0.1 * jax.random.normal(keys[7], (EMB,), jnp.float32),
        "w_out": 0.1 * jax.random.normal(keys[8], (2 * EMB, 1), jnp.float32),
        "b_out": 0.1 * jax.random.normal(keys[9], (1,), jnp.float32),
    }

    # Synthetic graph data (data.x, data.edge_index, data.batch).
    x = jax.random.normal(keys[10], (N, F_IN), jnp.float32)
    edge_index = jax.random.randint(keys[11], (2, NUM_EDGES), 0, N, jnp.int32)
    # First half of the nodes belongs to graph 0, second half to graph 1.
    batch_index = jnp.concatenate(
        [jnp.zeros((N // 2,), jnp.int32), jnp.ones((N - N // 2,), jnp.int32)])

    fwd = jax.jit(functools.partial(gcn_net_forward, num_graphs=B))
    out = fwd(params, x, edge_index, batch_index)
    jax.block_until_ready(out)

    assert out.shape == (B, 1) and out.dtype == jnp.float32
    assert bool(jnp.all(jnp.isfinite(out)))
    print("KERNEL_OK")
</pallas_src>

<mosaic_0001>
module attributes {stable_mosaic.version = 11 : i64} {
  func.func @gcn_forward_kernel(%arg0: memref<16x16xf32, #tpu.memory_space<vmem>>, %arg1: memref<16x8xf32, #tpu.memory_space<vmem>>, %arg2: memref<8x32xf32, #tpu.memory_space<vmem>>, %arg3: memref<1x32xf32, #tpu.memory_space<vmem>>, %arg4: memref<32x32xf32, #tpu.memory_space<vmem>>, %arg5: memref<1x32xf32, #tpu.memory_space<vmem>>, %arg6: memref<32x32xf32, #tpu.memory_space<vmem>>, %arg7: memref<1x32xf32, #tpu.memory_space<vmem>>, %arg8: memref<32x32xf32, #tpu.memory_space<vmem>>, %arg9: memref<1x32xf32, #tpu.memory_space<vmem>>, %arg10: memref<16x2xf32, #tpu.memory_space<vmem>>, %arg11: memref<2x16xf32, #tpu.memory_space<vmem>>, %arg12: memref<32x1xf32, #tpu.memory_space<vmem>>, %arg13: memref<32x1xf32, #tpu.memory_space<vmem>>, %arg14: memref<1x1xf32, #tpu.memory_space<vmem>>, %arg15: memref<2x128xf32, #tpu.memory_space<vmem>>) attributes {dimension_semantics = [], scalar_prefetch = 0 : i64, scratch_operands = 0 : i64, tpu.core_type = #tpu.core_type<tc>} {
    %c0 = arith.constant 0 : index
    %c0_0 = arith.constant 0 : index
    %0 = vector.load %arg0[%c0, %c0_0] : memref<16x16xf32, #tpu.memory_space<vmem>>, vector<16x16xf32>
    %c0_1 = arith.constant 0 : index
    %c0_2 = arith.constant 0 : index
    %1 = vector.load %arg1[%c0_1, %c0_2] : memref<16x8xf32, #tpu.memory_space<vmem>>, vector<16x8xf32>
    %c0_3 = arith.constant 0 : index
    %c0_4 = arith.constant 0 : index
    %2 = vector.load %arg2[%c0_3, %c0_4] : memref<8x32xf32, #tpu.memory_space<vmem>>, vector<8x32xf32>
    %cst = arith.constant dense<0.000000e+00> : vector<16x32xf32>
    %3 = tpu.matmul %1, %2, %cst {dimension_numbers = #tpu.dot_dimension_numbers<[1], [0], [0], [1], [0, 0, 1, 1], [], []>} : vector<16x8xf32>, vector<8x32xf32>, vector<16x32xf32> -> vector<16x32xf32>
    %cst_5 = arith.constant dense<0.000000e+00> : vector<16x32xf32>
    %4 = tpu.matmul %0, %3, %cst_5 {dimension_numbers = #tpu.dot_dimension_numbers<[1], [0], [0], [1], [0, 0, 1, 1], [], []>} : vector<16x16xf32>, vector<16x32xf32>, vector<16x32xf32> -> vector<16x32xf32>
    %c0_6 = arith.constant 0 : index
    %c0_7 = arith.constant 0 : index
    %5 = vector.load %arg3[%c0_6, %c0_7] : memref<1x32xf32, #tpu.memory_space<vmem>>, vector<1x32xf32>
    %6 = vector.broadcast %5 : vector<1x32xf32> to vector<16x32xf32>
    %7 = arith.addf %4, %6 : vector<16x32xf32>
    %8 = math.tanh %7 : vector<16x32xf32>
    %c0_8 = arith.constant 0 : index
    %c0_9 = arith.constant 0 : index
    %9 = vector.load %arg4[%c0_8, %c0_9] : memref<32x32xf32, #tpu.memory_space<vmem>>, vector<32x32xf32>
    %cst_10 = arith.constant dense<0.000000e+00> : vector<16x32xf32>
    %10 = tpu.matmul %8, %9, %cst_10 {dimension_numbers = #tpu.dot_dimension_numbers<[1], [0], [0], [1], [0, 0, 1, 1], [], []>} : vector<16x32xf32>, vector<32x32xf32>, vector<16x32xf32> -> vector<16x32xf32>
    %cst_11 = arith.constant dense<0.000000e+00> : vector<16x32xf32>
    %11 = tpu.matmul %0, %10, %cst_11 {dimension_numbers = #tpu.dot_dimension_numbers<[1], [0], [0], [1], [0, 0, 1, 1], [], []>} : vector<16x16xf32>, vector<16x32xf32>, vector<16x32xf32> -> vector<16x32xf32>
    %c0_12 = arith.constant 0 : index
    %c0_13 = arith.constant 0 : index
    %12 = vector.load %arg5[%c0_12, %c0_13] : memref<1x32xf32, #tpu.memory_space<vmem>>, vector<1x32xf32>
    %13 = vector.broadcast %12 : vector<1x32xf32> to vector<16x32xf32>
    %14 = arith.addf %11, %13 : vector<16x32xf32>
    %15 = math.tanh %14 : vector<16x32xf32>
    %c0_14 = arith.constant 0 : index
    %c0_15 = arith.constant 0 : index
    %16 = vector.load %arg6[%c0_14, %c0_15] : memref<32x32xf32, #tpu.memory_space<vmem>>, vector<32x32xf32>
    %cst_16 = arith.constant dense<0.000000e+00> : vector<16x32xf32>
    %17 = tpu.matmul %15, %16, %cst_16 {dimension_numbers = #tpu.dot_dimension_numbers<[1], [0], [0], [1], [0, 0, 1, 1], [], []>} : vector<16x32xf32>, vector<32x32xf32>, vector<16x32xf32> -> vector<16x32xf32>
    %cst_17 = arith.constant dense<0.000000e+00> : vector<16x32xf32>
    %18 = tpu.matmul %0, %17, %cst_17 {dimension_numbers = #tpu.dot_dimension_numbers<[1], [0], [0], [1], [0, 0, 1, 1], [], []>} : vector<16x16xf32>, vector<16x32xf32>, vector<16x32xf32> -> vector<16x32xf32>
    %c0_18 = arith.constant 0 : index
    %c0_19 = arith.constant 0 : index
    %19 = vector.load %arg7[%c0_18, %c0_19] : memref<1x32xf32, #tpu.memory_space<vmem>>, vector<1x32xf32>
    %20 = vector.broadcast %19 : vector<1x32xf32> to vector<16x32xf32>
    %21 = arith.addf %18, %20 : vector<16x32xf32>
    %22 = math.tanh %21 : vector<16x32xf32>
    %c0_20 = arith.constant 0 : index
    %c0_21 = arith.constant 0 : index
    %23 = vector.load %arg8[%c0_20, %c0_21] : memref<32x32xf32, #tpu.memory_space<vmem>>, vector<32x32xf32>
    %cst_22 = arith.constant dense<0.000000e+00> : vector<16x32xf32>
    %24 = tpu.matmul %22, %23, %cst_22 {dimension_numbers = #tpu.dot_dimension_numbers<[1], [0], [0], [1], [0, 0, 1, 1], [], []>} : vector<16x32xf32>, vector<32x32xf32>, vector<16x32xf32> -> vector<16x32xf32>
    %cst_23 = arith.constant dense<0.000000e+00> : vector<16x32xf32>
    %25 = tpu.matmul %0, %24, %cst_23 {dimension_numbers = #tpu.dot_dimension_numbers<[1], [0], [0], [1], [0, 0, 1, 1], [], []>} : vector<16x16xf32>, vector<16x32xf32>, vector<16x32xf32> -> vector<16x32xf32>
    %c0_24 = arith.constant 0 : index
    %c0_25 = arith.constant 0 : index
    %26 = vector.load %arg9[%c0_24, %c0_25] : memref<1x32xf32, #tpu.memory_space<vmem>>, vector<1x32xf32>
    %27 = vector.broadcast %26 : vector<1x32xf32> to vector<16x32xf32>
    %28 = arith.addf %25, %27 : vector<16x32xf32>
    %29 = math.tanh %28 : vector<16x32xf32>
    %c0_26 = arith.constant 0 : index
    %c0_27 = arith.constant 0 : index
    %30 = vector.load %arg10[%c0_26, %c0_27] : memref<16x2xf32, #tpu.memory_space<vmem>>, vector<16x1xf32>
    %cst_28 = arith.constant 0.000000e+00 : f32
    %31 = vector.broadcast %cst_28 : f32 to vector<16x1xf32>
    %32 = arith.cmpf ogt, %30, %31 : vector<16x1xf32>
    %cst_29 = arith.constant -1.000000e+30 : f32
    %33 = vector.shape_cast %32 : vector<16x1xi1> to vector<16x1xi1>
    %34 = vector.broadcast %33 : vector<16x1xi1> to vector<16x32xi1>
    %35 = vector.broadcast %cst_29 : f32 to vector<16x32xf32>
    %36 = arith.select %34, %29, %35 : vector<16x32xi1>, vector<16x32xf32>
    %cst_30 = arith.constant dense<0xFF800000> : vector<32xf32>
    %37 = vector.multi_reduction <maximumf>, %36, %cst_30 [0] : vector<16x32xf32> to vector<32xf32>
    %38 = vector.shape_cast %37 : vector<32xf32> to vector<1x32xf32>
    %c0_31 = arith.constant 0 : index
    %c1 = arith.constant 1 : index
    %39 = vector.load %arg10[%c0_31, %c1] : memref<16x2xf32, #tpu.memory_space<vmem>>, vector<16x1xf32>
    %cst_32 = arith.constant 0.000000e+00 : f32
    %40 = vector.broadcast %cst_32 : f32 to vector<16x1xf32>
    %41 = arith.cmpf ogt, %39, %40 : vector<16x1xf32>
    %cst_33 = arith.constant -1.000000e+30 : f32
    %42 = vector.shape_cast %41 : vector<16x1xi1> to vector<16x1xi1>
    %43 = vector.broadcast %42 : vector<16x1xi1> to vector<16x32xi1>
    %44 = vector.broadcast %cst_33 : f32 to vector<16x32xf32>
    %45 = arith.select %43, %29, %44 : vector<16x32xi1>, vector<16x32xf32>
    %cst_34 = arith.constant dense<0xFF800000> : vector<32xf32>
    %46 = vector.multi_reduction <maximumf>, %45, %cst_34 [0] : vector<16x32xf32> to vector<32xf32>
    %47 = vector.shape_cast %46 : vector<32xf32> to vector<1x32xf32>
    %48 = tpu.concatenate %38, %47 in 0 : vector<1x32xf32>, vector<1x32xf32> -> vector<2x32xf32>
    %c0_35 = arith.constant 0 : index
    %c0_36 = arith.constant 0 : index
    %49 = vector.load %arg11[%c0_35, %c0_36] : memref<2x16xf32, #tpu.memory_space<vmem>>, vector<2x16xf32>
    %cst_37 = arith.constant dense<0.000000e+00> : vector<2x32xf32>
    %50 = tpu.matmul %49, %29, %cst_37 {dimension_numbers = #tpu.dot_dimension_numbers<[1], [0], [0], [1], [0, 0, 1, 1], [], []>} : vector<2x16xf32>, vector<16x32xf32>, vector<2x32xf32> -> vector<2x32xf32>
    %c0_38 = arith.constant 0 : index
    %c0_39 = arith.constant 0 : index
    %51 = vector.load %arg12[%c0_38, %c0_39] : memref<32x1xf32, #tpu.memory_space<vmem>>, vector<32x1xf32>
    %cst_40 = arith.constant dense<0.000000e+00> : vector<2x1xf32>
    %52 = tpu.matmul %48, %51, %cst_40 {dimension_numbers = #tpu.dot_dimension_numbers<[1], [0], [0], [1], [0, 0, 1, 1], [], []>} : vector<2x32xf32>, vector<32x1xf32>, vector<2x1xf32> -> vector<2x1xf32>
    %c0_41 = arith.constant 0 : index
    %c0_42 = arith.constant 0 : index
    %53 = vector.load %arg13[%c0_41, %c0_42] : memref<32x1xf32, #tpu.memory_space<vmem>>, vector<32x1xf32>
    %cst_43 = arith.constant dense<0.000000e+00> : vector<2x1xf32>
    %54 = tpu.matmul %50, %53, %cst_43 {dimension_numbers = #tpu.dot_dimension_numbers<[1], [0], [0], [1], [0, 0, 1, 1], [], []>} : vector<2x32xf32>, vector<32x1xf32>, vector<2x1xf32> -> vector<2x1xf32>
    %55 = arith.addf %52, %54 : vector<2x1xf32>
    %c0_44 = arith.constant 0 : index
    %c0_45 = arith.constant 0 : index
    %56 = vector.load %arg14[%c0_44, %c0_45] : memref<1x1xf32, #tpu.memory_space<vmem>>, vector<1x1xf32>
    %57 = vector.broadcast %56 : vector<1x1xf32> to vector<2x1xf32>
    %58 = arith.addf %55, %57 : vector<2x1xf32>
    %59 = vector.shape_cast %58 : vector<2x1xf32> to vector<2x1xf32>
    %60 = vector.broadcast %59 : vector<2x1xf32> to vector<2x128xf32>
    %c0_46 = arith.constant 0 : index
    %c0_47 = arith.constant 0 : index
    %61 = vector.load %arg15[%c0_46, %c0_47] : memref<2x128xf32, #tpu.memory_space<vmem>>, vector<2x128xf32>
    tpu.vector_store %arg15[%c0_46, %c0_47], %60 {strides = array<i32>} : memref<2x128xf32, #tpu.memory_space<vmem>>, vector<2x128xf32>,
    return
  }
}

</mosaic_0001>

<llo_original>
// kernel: gcn_net_forward.1
$region0: #{gcn_net_forward.1}
  #allocation0 [shape = 'u32[]', space=smem, size = 0x4, offset = 0x4, fixed_abs, tag = 'smem constant byte address 0x4 - core index']
  #allocation1 [shape = 'u32[144,128]{1,0:T(1,128)}', space=vmem, size = 0x12000, scoped, tag = 'internal scratch']
  #allocation2 [shape = 'f32[1,1]{1,0:T(1,128)S(1)}', space=vmem, size = 0x200, scoped, tag = 'scoped memory for gcn_net_forward.1']
  %s0 = inlined_call_operand.vmem [shape: f32[16,16], index: 0, kind: input, shape index: {}]
  %s1 = inlined_call_operand.vmem [shape: f32[16,8], index: 1, kind: input, shape index: {}]
  %s2 = inlined_call_operand.vmem [shape: f32[8,32], index: 2, kind: input, shape index: {}]
  %s3 = inlined_call_operand.vmem [shape: f32[1,32], index: 3, kind: input, shape index: {}]
  %s4 = inlined_call_operand.vmem [shape: f32[32,32], index: 4, kind: input, shape index: {}]
  %s5 = inlined_call_operand.vmem [shape: f32[1,32], index: 5, kind: input, shape index: {}]
  %s6 = inlined_call_operand.vmem [shape: f32[32,32], index: 6, kind: input, shape index: {}]
  %s7 = inlined_call_operand.vmem [shape: f32[1,32], index: 7, kind: input, shape index: {}]
  %s8 = inlined_call_operand.vmem [shape: f32[32,32], index: 8, kind: input, shape index: {}]
  %s9 = inlined_call_operand.vmem [shape: f32[1,32], index: 9, kind: input, shape index: {}]
  %s10 = inlined_call_operand.vmem [shape: f32[16,2], index: 10, kind: input, shape index: {}]
  %s11 = inlined_call_operand.vmem [shape: f32[2,16], index: 11, kind: input, shape index: {}]
  %s12 = inlined_call_operand.vmem [shape: f32[32,1], index: 12, kind: input, shape index: {}]
  %s13 = inlined_call_operand.vmem [shape: f32[32,1], index: 13, kind: input, shape index: {}]
  %s14 = inlined_call_operand.<no memory space> [shape: f32[1,1], index: 14, kind: input, shape index: {}]
  %s15 = inlined_call_operand.vmem [shape: f32[2,128], index: 15, kind: output, shape index: {}]
  %s16 = sld [smem:[#allocation0]]
  $region70: #{gcn_net_forward.1} parent=0
    _
  %s18 = ssub.s32 1, %s16
  %s19 = scalar_select 0, %s18, %s16
  %v20 = vstv %s14
  %21 = vst [vmem:[#allocation2] sm:$0x1] %v20
  // Predicated region
  $region2: #{gcn_net_forward.1} parent=0 // pred_check
    _
  $region3: #{gcn_net_forward.1} parent=0 // pred_check_branch
    %23 = sbr.rel (0) target = $region5
  $region4: #{gcn_net_forward.1} parent=0 // pred_region
    _
  $region5: #{gcn_net_forward.1} parent=0 // pred_fallthru
    _
  // Predicated region
  $region6: #{gcn_net_forward.1} parent=0 // pred_check
    _
  $region7: #{gcn_net_forward.1} parent=0 // pred_check_branch
    %25 = sbr.rel (0) target = $region9
  $region8: #{gcn_net_forward.1} parent=0 // pred_region
    _
  $region9: #{gcn_net_forward.1} parent=0 // pred_fallthru
    _
  // Predicated region
  $region10: #{gcn_net_forward.1} parent=0 // pred_check
    _
  $region11: #{gcn_net_forward.1} parent=0 // pred_check_branch
    %27 = sbr.rel (0) target = $region13
  $region12: #{gcn_net_forward.1} parent=0 // pred_region
    _
  $region13: #{gcn_net_forward.1} parent=0 // pred_fallthru
    _
  // Predicated region
  $region14: #{gcn_net_forward.1} parent=0 // pred_check
    _
  $region15: #{gcn_net_forward.1} parent=0 // pred_check_branch
    %29 = sbr.rel (0) target = $region17
  $region16: #{gcn_net_forward.1} parent=0 // pred_region
    _
  $region17: #{gcn_net_forward.1} parent=0 // pred_fallthru
    _
  // Predicated region
  $region18: #{gcn_net_forward.1} parent=0 // pred_check
    _
  $region19: #{gcn_net_forward.1} parent=0 // pred_check_branch
    %31 = sbr.rel (0) target = $region21
  $region20: #{gcn_net_forward.1} parent=0 // pred_region
    _
  $region21: #{gcn_net_forward.1} parent=0 // pred_fallthru
    _
  // Predicated region
  $region22: #{gcn_net_forward.1} parent=0 // pred_check
    _
  $region23: #{gcn_net_forward.1} parent=0 // pred_check_branch
    %33 = sbr.rel (0) target = $region25
  $region24: #{gcn_net_forward.1} parent=0 // pred_region
    _
  $region25: #{gcn_net_forward.1} parent=0 // pred_fallthru
    _
  // Predicated region
  $region26: #{gcn_net_forward.1} parent=0 // pred_check
    _
  $region27: #{gcn_net_forward.1} parent=0 // pred_check_branch
    %35 = sbr.rel (0) target = $region29
  $region28: #{gcn_net_forward.1} parent=0 // pred_region
    _
  $region29: #{gcn_net_forward.1} parent=0 // pred_fallthru
    _
  // Predicated region
  $region30: #{gcn_net_forward.1} parent=0 // pred_check
    _
  $region31: #{gcn_net_forward.1} parent=0 // pred_check_branch
    %37 = sbr.rel (0) target = $region33
  $region32: #{gcn_net_forward.1} parent=0 // pred_region
    _
  $region33: #{gcn_net_forward.1} parent=0 // pred_fallthru
    _
  // Predicated region
  $region34: #{gcn_net_forward.1} parent=0 // pred_check
    _
  $region35: #{gcn_net_forward.1} parent=0 // pred_check_branch
    %39 = sbr.rel (0) target = $region37
  $region36: #{gcn_net_forward.1} parent=0 // pred_region
    _
  $region37: #{gcn_net_forward.1} parent=0 // pred_fallthru
    _
  // Predicated region
  $region38: #{gcn_net_forward.1} parent=0 // pred_check
    _
  $region39: #{gcn_net_forward.1} parent=0 // pred_check_branch
    %41 = sbr.rel (0) target = $region41
  $region40: #{gcn_net_forward.1} parent=0 // pred_region
    _
  $region41: #{gcn_net_forward.1} parent=0 // pred_fallthru
    _
  // Predicated region
  $region42: #{gcn_net_forward.1} parent=0 // pred_check
    _
  $region43: #{gcn_net_forward.1} parent=0 // pred_check_branch
    %43 = sbr.rel (0) target = $region45
  $region44: #{gcn_net_forward.1} parent=0 // pred_region
    _
  $region45: #{gcn_net_forward.1} parent=0 // pred_fallthru
    _
  // Predicated region
  $region46: #{gcn_net_forward.1} parent=0 // pred_check
    _
  $region47: #{gcn_net_forward.1} parent=0 // pred_check_branch
    %45 = sbr.rel (0) target = $region49
  $region48: #{gcn_net_forward.1} parent=0 // pred_region
    _
  $region49: #{gcn_net_forward.1} parent=0 // pred_fallthru
    _
  // Predicated region
  $region50: #{gcn_net_forward.1} parent=0 // pred_check
    _
  $region51: #{gcn_net_forward.1} parent=0 // pred_check_branch
    %47 = sbr.rel (0) target = $region53
  $region52: #{gcn_net_forward.1} parent=0 // pred_region
    _
  $region53: #{gcn_net_forward.1} parent=0 // pred_fallthru
    _
  // Predicated region
  $region54: #{gcn_net_forward.1} parent=0 // pred_check
    _
  $region55: #{gcn_net_forward.1} parent=0 // pred_check_branch
    %49 = sbr.rel (0) target = $region57
  $region56: #{gcn_net_forward.1} parent=0 // pred_region
    _
  $region57: #{gcn_net_forward.1} parent=0 // pred_fallthru
    _
  // Predicated region
  $region58: #{gcn_net_forward.1} parent=0 // pred_check
    _
  $region59: #{gcn_net_forward.1} parent=0 // pred_check_branch
    %51 = sbr.rel (0) target = $region61
  $region60: #{gcn_net_forward.1} parent=0 // pred_region
    _
  $region61: #{gcn_net_forward.1} parent=0 // pred_fallthru
    _
  %v52 = vld [vmem:[%s0] sm:$0xff]
  %v53 = vld [vmem:[%s0 + $0x8] sm:$0xff]
  %v54 = vld [vmem:[%s1] sm:$0xff]
  %v55 = vld [vmem:[%s1 + $0x8] sm:$0xff]
  %v56 = vld [vmem:[%s2] sm:$0xff]
  %vm57 = vcmask 64512
  %v59 = vsel %vm57, %v54, 0
  %v62 = vsel %vm57, %v55, 0
  %64 = vmatprep.subr.mxu0 0.0
  %65 = vmatpush1.msra.mxu0 %v56
  %66 = vmatprep.subr.mxu0 0.0
  %67 = vmatpush1.msra.mxu0 0.0
  %68 = vmatprep.subr.mxu0 0.0
  %69 = vmatpush1.msra.mxu0 0.0
  %70 = vmatprep.subr.mxu0 0.0
  %71 = vmatpush1.msra.mxu0 0.0
  %72 = vmatprep.subr.mxu0 0.0
  %73 = vmatpush1.msra.mxu0 0.0
  %74 = vmatprep.subr.mxu0 0.0
  %75 = vmatpush1.msra.mxu0 0.0
  %76 = vmatprep.subr.mxu0 0.0
  %77 = vmatpush1.msra.mxu0 0.0
  %78 = vmatprep.subr.mxu0 0.0
  %79 = vmatpush1.msra.mxu0 0.0
  %80 = vmatprep.subr.mxu0 0.0
  %81 = vmatpush1.msra.mxu0 0.0
  %82 = vmatprep.subr.mxu0 0.0
  %83 = vmatpush1.msra.mxu0 0.0
  %84 = vmatprep.subr.mxu0 0.0
  %85 = vmatpush1.msra.mxu0 0.0
  %86 = vmatprep.subr.mxu0 0.0
  %87 = vmatpush1.msra.mxu0 0.0
  %88 = vmatprep.subr.mxu0 0.0
  %89 = vmatpush1.msra.mxu0 0.0
  %90 = vmatprep.subr.mxu0 0.0
  %91 = vmatpush1.msra.mxu0 0.0
  %92 = vmatprep.subr.mxu0 0.0
  %93 = vmatpush1.msra.mxu0 0.0
  %94 = vmatprep.subr.mxu0 0.0
  %95 = vmatpush1.msra.mxu0 0.0
  %96 = vmatprep.subr.mxu0 0.0
  %97 = vmatpush1.msra.mxu0 0.0
  %98 = vmatprep.subr.mxu0 0.0
  %99 = vmatpush1.msra.mxu0 0.0
  %100 = vmatprep.subr.mxu0 0.0
  %101 = vmatpush1.msra.mxu0 0.0
  %102 = vmatprep.subr.mxu0 0.0
  %103 = vmatpush1.msra.mxu0 0.0
  %104 = vmatprep.subr.mxu0 0.0
  %105 = vmatpush1.msra.mxu0 0.0
  %106 = vmatprep.subr.mxu0 0.0
  %107 = vmatpush1.msra.mxu0 0.0
  %108 = vmatprep.subr.mxu0 0.0
  %109 = vmatpush1.msra.mxu0 0.0
  %110 = vmatprep.subr.mxu0 0.0
  %111 = vmatpush1.msra.mxu0 0.0
  %112 = vmatprep.subr.mxu0 0.0
  %113 = vmatpush1.msra.mxu0 0.0
  %114 = vmatprep.subr.mxu0 0.0
  %115 = vmatpush1.msra.mxu0 0.0
  %116 = vmatprep.subr.mxu0 0.0
  %117 = vmatpush1.msra.mxu0 0.0
  %118 = vmatprep.subr.mxu0 0.0
  %119 = vmatpush1.msra.mxu0 0.0
  %120 = vmatprep.subr.mxu0 0.0
  %121 = vmatpush1.msra.mxu0 0.0
  %122 = vmatprep.subr.mxu0 0.0
  %123 = vmatpush1.msra.mxu0 0.0
  %124 = vmatprep.subr.mxu0 0.0
  %125 = vmatpush1.msra.mxu0 0.0
  %126 = vmatprep.subr.mxu0 0.0
  %127 = vmatpush1.msra.mxu0 0.0
  %128 = vmatprep.mubr.f32.mxu0 0.0
  %129 = vmatmul.mubr.f32.gmra.mrb[0].mxu0 %v59
  %v130 = vpop.f32.mrb[0].mxu0
  %v131 = vadd.f32 0.0, %v130
  %v132 = vpop.f32.mrb[0].mxu0
  %133 = vmatprep.mubr.f32.mxu0 0.0
  %134 = vmatmul.mubr.f32.gmra.mrb[0].mxu0 %v62
  %v135 = vpop.f32.mrb[0].mxu0
  %v136 = vadd.f32 0.0, %v135
  %v137 = vpop.f32.mrb[0].mxu0
  %138 = vdwg.mxu0
  %v139 = vld [vmem:[%s3] sm:$0x1]
  %v141 = vlaneseq
  %v142 = vshrl.u32 %v141, 7
  %v143 = vsub.s32 0, %v142
  %v144 = vrot.slane %v139, %v143
  %vm146 = vcmask 130048
  %v148 = vsel %vm146, %v52, 0
  %v151 = vsel %vm146, %v53, 0
  %153 = vmatprep.subr.mxu0 0.0
  %154 = vmatpush1.msra.mxu0 %v131
  %155 = vmatprep.subr.mxu0 0.0
  %156 = vmatpush1.msra.mxu0 %v136
  %157 = vmatprep.subr.mxu0 0.0
  %158 = vmatpush1.msra.mxu0 0.0
  %159 = vmatprep.subr.mxu0 0.0
  %160 = vmatpush1.msra.mxu0 0.0
  %161 = vmatprep.subr.mxu0 0.0
  %162 = vmatpush1.msra.mxu0 0.0
  %163 = vmatprep.subr.mxu0 0.0
  %164 = vmatpush1.msra.mxu0 0.0
  %165 = vmatprep.subr.mxu0 0.0
  %166 = vmatpush1.msra.mxu0 0.0
  %167 = vmatprep.subr.mxu0 0.0
  %168 = vmatpush1.msra.mxu0 0.0
  %169 = vmatprep.subr.mxu0 0.0
  %170 = vmatpush1.msra.mxu0 0.0
  %171 = vmatprep.subr.mxu0 0.0
  %172 = vmatpush1.msra.mxu0 0.0
  %173 = vmatprep.subr.mxu0 0.0
  %174 = vmatpush1.msra.mxu0 0.0
  %175 = vmatprep.subr.mxu0 0.0
  %176 = vmatpush1.msra.mxu0 0.0
  %177 = vmatprep.subr.mxu0 0.0
  %178 = vmatpush1.msra.mxu0 0.0
  %179 = vmatprep.subr.mxu0 0.0
  %180 = vmatpush1.msra.mxu0 0.0
  %181 = vmatprep.subr.mxu0 0.0
  %182 = vmatpush1.msra.mxu0 0.0
  %183 = vmatprep.subr.mxu0 0.0
  %184 = vmatpush1.msra.mxu0 0.0
  %185 = vmatprep.subr.mxu0 0.0
  %186 = vmatpush1.msra.mxu0 0.0
  %187 = vmatprep.subr.mxu0 0.0
  %188 = vmatpush1.msra.mxu0 0.0
  %189 = vmatprep.subr.mxu0 0.0
  %190 = vmatpush1.msra.mxu0 0.0
  %191 = vmatprep.subr.mxu0 0.0
  %192 = vmatpush1.msra.mxu0 0.0
  %193 = vmatprep.subr.mxu0 0.0
  %194 = vmatpush1.msra.mxu0 0.0
  %195 = vmatprep.subr.mxu0 0.0
  %196 = vmatpush1.msra.mxu0 0.0
  %197 = vmatprep.subr.mxu0 0.0
  %198 = vmatpush1.msra.mxu0 0.0
  %199 = vmatprep.subr.mxu0 0.0
  %200 = vmatpush1.msra.mxu0 0.0
  %201 = vmatprep.subr.mxu0 0.0
  %202 = vmatpush1.msra.mxu0 0.0
  %203 = vmatprep.subr.mxu0 0.0
  %204 = vmatpush1.msra.mxu0 0.0
  %205 = vmatprep.subr.mxu0 0.0
  %206 = vmatpush1.msra.mxu0 0.0
  %207 = vmatprep.subr.mxu0 0.0
  %208 = vmatpush1.msra.mxu0 0.0
  %209 = vmatprep.subr.mxu0 0.0
  %210 = vmatpush1.msra.mxu0 0.0
  %211 = vmatprep.subr.mxu0 0.0
  %212 = vmatpush1.msra.mxu0 0.0
  %213 = vmatprep.subr.mxu0 0.0
  %214 = vmatpush1.msra.mxu0 0.0
  %215 = vmatprep.subr.mxu0 0.0
  %216 = vmatpush1.msra.mxu0 0.0
  %217 = vmatprep.mubr.f32.mxu0 0.0
  %218 = vmatmul.mubr.f32.gmra.mrb[0].mxu0 %v148
  %v219 = vpop.f32.mrb[0].mxu0
  %v220 = vadd.f32 %v144, %v219
  %v221 = vpop.f32.mrb[0].mxu0
  %222 = vmatprep.mubr.f32.mxu0 0.0
  %223 = vmatmul.mubr.f32.gmra.mrb[0].mxu0 %v151
  %v224 = vpop.f32.mrb[0].mxu0
  %v225 = vadd.f32 %v144, %v224
  %v226 = vpop.f32.mrb[0].mxu0
  %227 = vdwg.mxu0
  %v228 = vtanh.pop %v220
  %v229 = vtanh.pop %v225
  %v230 = vld [vmem:[%s4] sm:$0xff]
  %v231 = vld [vmem:[%s4 + $0x8] sm:$0xff]
  %v232 = vld [vmem:[%s4 + $0x10] sm:$0xff]
  %v233 = vld [vmem:[%s4 + $0x18] sm:$0xff]
  %vm234 = vcmask 261120
  %v236 = vsel %vm234, %v228, 0
  %v239 = vsel %vm234, %v229, 0
  %241 = vmatprep.subr.mxu0 0.0
  %242 = vmatpush1.msra.mxu0 %v230
  %243 = vmatprep.subr.mxu0 0.0
  %244 = vmatpush1.msra.mxu0 %v231
  %245 = vmatprep.subr.mxu0 0.0
  %246 = vmatpush1.msra.mxu0 %v232
  %247 = vmatprep.subr.mxu0 0.0
  %248 = vmatpush1.msra.mxu0 %v233
  %249 = vmatprep.subr.mxu0 0.0
  %250 = vmatpush1.msra.mxu0 0.0
  %251 = vmatprep.subr.mxu0 0.0
  %252 = vmatpush1.msra.mxu0 0.0
  %253 = vmatprep.subr.mxu0 0.0
  %254 = vmatpush1.msra.mxu0 0.0
  %255 = vmatprep.subr.mxu0 0.0
  %256 = vmatpush1.msra.mxu0 0.0
  %257 = vmatprep.subr.mxu0 0.0
  %258 = vmatpush1.msra.mxu0 0.0
  %259 = vmatprep.subr.mxu0 0.0
  %260 = vmatpush1.msra.mxu0 0.0
  %261 = vmatprep.subr.mxu0 0.0
  %262 = vmatpush1.msra.mxu0 0.0
  %263 = vmatprep.subr.mxu0 0.0
  %264 = vmatpush1.msra.mxu0 0.0
  %265 = vmatprep.subr.mxu0 0.0
  %266 = vmatpush1.msra.mxu0 0.0
  %267 = vmatprep.subr.mxu0 0.0
  %268 = vmatpush1.msra.mxu0 0.0
  %269 = vmatprep.subr.mxu0 0.0
  %270 = vmatpush1.msra.mxu0 0.0
  %271 = vmatprep.subr.mxu0 0.0
  %272 = vmatpush1.msra.mxu0 0.0
  %273 = vmatprep.subr.mxu0 0.0
  %274 = vmatpush1.msra.mxu0 0.0
  %275 = vmatprep.subr.mxu0 0.0
  %276 = vmatpush1.msra.mxu0 0.0
  %277 = vmatprep.subr.mxu0 0.0
  %278 = vmatpush1.msra.mxu0 0.0
  %279 = vmatprep.subr.mxu0 0.0
  %280 = vmatpush1.msra.mxu0 0.0
  %281 = vmatprep.subr.mxu0 0.0
  %282 = vmatpush1.msra.mxu0 0.0
  %283 = vmatprep.subr.mxu0 0.0
  %284 = vmatpush1.msra.mxu0 0.0
  %285 = vmatprep.subr.mxu0 0.0
  %286 = vmatpush1.msra.mxu0 0.0
  %287 = vmatprep.subr.mxu0 0.0
  %288 = vmatpush1.msra.mxu0 0.0
  %289 = vmatprep.subr.mxu0 0.0
  %290 = vmatpush1.msra.mxu0 0.0
  %291 = vmatprep.subr.mxu0 0.0
  %292 = vmatpush1.msra.mxu0 0.0
  %293 = vmatprep.subr.mxu0 0.0
  %294 = vmatpush1.msra.mxu0 0.0
  %295 = vmatprep.subr.mxu0 0.0
  %296 = vmatpush1.msra.mxu0 0.0
  %297 = vmatprep.subr.mxu0 0.0
  %298 = vmatpush1.msra.mxu0 0.0
  %299 = vmatprep.subr.mxu0 0.0
  %300 = vmatpush1.msra.mxu0 0.0
  %301 = vmatprep.subr.mxu0 0.0
  %302 = vmatpush1.msra.mxu0 0.0
  %303 = vmatprep.subr.mxu0 0.0
  %304 = vmatpush1.msra.mxu0 0.0
  %305 = vmatprep.mubr.f32.mxu0 0.0
  %306 = vmatmul.mubr.f32.gmra.mrb[0].mxu0 %v236
  %v307 = vpop.f32.mrb[0].mxu0
  %v308 = vadd.f32 0.0, %v307
  %v309 = vpop.f32.mrb[0].mxu0
  %310 = vmatprep.mubr.f32.mxu0 0.0
  %311 = vmatmul.mubr.f32.gmra.mrb[0].mxu0 %v239
  %v312 = vpop.f32.mrb[0].mxu0
  %v313 = vadd.f32 0.0, %v312
  %v314 = vpop.f32.mrb[0].mxu0
  %315 = vdwg.mxu0
  %v316 = vld [vmem:[%s5] sm:$0x1]
  %v318 = vlaneseq
  %v319 = vshrl.u32 %v318, 7
  %v320 = vsub.s32 0, %v319
  %v321 = vrot.slane %v316, %v320
  %323 = vmatprep.subr.mxu0 0.0
  %324 = vmatpush1.msra.mxu0 %v308
  %325 = vmatprep.subr.mxu0 0.0
  %326 = vmatpush1.msra.mxu0 %v313
  %327 = vmatprep.subr.mxu0 0.0
  %328 = vmatpush1.msra.mxu0 0.0
  %329 = vmatprep.subr.mxu0 0.0
  %330 = vmatpush1.msra.mxu0 0.0
  %331 = vmatprep.subr.mxu0 0.0
  %332 = vmatpush1.msra.mxu0 0.0
  %333 = vmatprep.subr.mxu0 0.0
  %334 = vmatpush1.msra.mxu0 0.0
  %335 = vmatprep.subr.mxu0 0.0
  %336 = vmatpush1.msra.mxu0 0.0
  %337 = vmatprep.subr.mxu0 0.0
  %338 = vmatpush1.msra.mxu0 0.0
  %339 = vmatprep.subr.mxu0 0.0
  %340 = vmatpush1.msra.mxu0 0.0
  %341 = vmatprep.subr.mxu0 0.0
  %342 = vmatpush1.msra.mxu0 0.0
  %343 = vmatprep.subr.mxu0 0.0
  %344 = vmatpush1.msra.mxu0 0.0
  %345 = vmatprep.subr.mxu0 0.0
  %346 = vmatpush1.msra.mxu0 0.0
  %347 = vmatprep.subr.mxu0 0.0
  %348 = vmatpush1.msra.mxu0 0.0
  %349 = vmatprep.subr.mxu0 0.0
  %350 = vmatpush1.msra.mxu0 0.0
  %351 = vmatprep.subr.mxu0 0.0
  %352 = vmatpush1.msra.mxu0 0.0
  %353 = vmatprep.subr.mxu0 0.0
  %354 = vmatpush1.msra.mxu0 0.0
  %355 = vmatprep.subr.mxu0 0.0
  %356 = vmatpush1.msra.mxu0 0.0
  %357 = vmatprep.subr.mxu0 0.0
  %358 = vmatpush1.msra.mxu0 0.0
  %359 = vmatprep.subr.mxu0 0.0
  %360 = vmatpush1.msra.mxu0 0.0
  %361 = vmatprep.subr.mxu0 0.0
  %362 = vmatpush1.msra.mxu0 0.0
  %363 = vmatprep.subr.mxu0 0.0
  %364 = vmatpush1.msra.mxu0 0.0
  %365 = vmatprep.subr.mxu0 0.0
  %366 = vmatpush1.msra.mxu0 0.0
  %367 = vmatprep.subr.mxu0 0.0
  %368 = vmatpush1.msra.mxu0 0.0
  %369 = vmatprep.subr.mxu0 0.0
  %370 = vmatpush1.msra.mxu0 0.0
  %371 = vmatprep.subr.mxu0 0.0
  %372 = vmatpush1.msra.mxu0 0.0
  %373 = vmatprep.subr.mxu0 0.0
  %374 = vmatpush1.msra.mxu0 0.0
  %375 = vmatprep.subr.mxu0 0.0
  %376 = vmatpush1.msra.mxu0 0.0
  %377 = vmatprep.subr.mxu0 0.0
  %378 = vmatpush1.msra.mxu0 0.0
  %379 = vmatprep.subr.mxu0 0.0
  %380 = vmatpush1.msra.mxu0 0.0
  %381 = vmatprep.subr.mxu0 0.0
  %382 = vmatpush1.msra.mxu0 0.0
  %383 = vmatprep.subr.mxu0 0.0
  %384 = vmatpush1.msra.mxu0 0.0
  %385 = vmatprep.subr.mxu0 0.0
  %386 = vmatpush1.msra.mxu0 0.0
  %387 = vmatprep.mubr.f32.mxu0 0.0
  %388 = vmatmul.mubr.f32.gmra.mrb[0].mxu0 %v148
  %v389 = vpop.f32.mrb[0].mxu0
  %v390 = vadd.f32 %v321, %v389
  %v391 = vpop.f32.mrb[0].mxu0
  %392 = vmatprep.mubr.f32.mxu0 0.0
  %393 = vmatmul.mubr.f32.gmra.mrb[0].mxu0 %v151
  %v394 = vpop.f32.mrb[0].mxu0
  %v395 = vadd.f32 %v321, %v394
  %v396 = vpop.f32.mrb[0].mxu0
  %397 = vdwg.mxu0
  %v398 = vtanh.pop %v390
  %v399 = vtanh.pop %v395
  %v400 = vld [vmem:[%s6] sm:$0xff]
  %v401 = vld [vmem:[%s6 + $0x8] sm:$0xff]
  %v402 = vld [vmem:[%s6 + $0x10] sm:$0xff]
  %v403 = vld [vmem:[%s6 + $0x18] sm:$0xff]
  %v405 = vsel %vm234, %v398, 0
  %v408 = vsel %vm234, %v399, 0
  %410 = vmatprep.subr.mxu0 0.0
  %411 = vmatpush1.msra.mxu0 %v400
  %412 = vmatprep.subr.mxu0 0.0
  %413 = vmatpush1.msra.mxu0 %v401
  %414 = vmatprep.subr.mxu0 0.0
  %415 = vmatpush1.msra.mxu0 %v402
  %416 = vmatprep.subr.mxu0 0.0
  %417 = vmatpush1.msra.mxu0 %v403
  %418 = vmatprep.subr.mxu0 0.0
  %419 = vmatpush1.msra.mxu0 0.0
  %420 = vmatprep.subr.mxu0 0.0
  %421 = vmatpush1.msra.mxu0 0.0
  %422 = vmatprep.subr.mxu0 0.0
  %423 = vmatpush1.msra.mxu0 0.0
  %424 = vmatprep.subr.mxu0 0.0
  %425 = vmatpush1.msra.mxu0 0.0
  %426 = vmatprep.subr.mxu0 0.0
  %427 = vmatpush1.msra.mxu0 0.0
  %428 = vmatprep.subr.mxu0 0.0
  %429 = vmatpush1.msra.mxu0 0.0
  %430 = vmatprep.subr.mxu0 0.0
  %431 = vmatpush1.msra.mxu0 0.0
  %432 = vmatprep.subr.mxu0 0.0
  %433 = vmatpush1.msra.mxu0 0.0
  %434 = vmatprep.subr.mxu0 0.0
  %435 = vmatpush1.msra.mxu0 0.0
  %436 = vmatprep.subr.mxu0 0.0
  %437 = vmatpush1.msra.mxu0 0.0
  %438 = vmatprep.subr.mxu0 0.0
  %439 = vmatpush1.msra.mxu0 0.0
  %440 = vmatprep.subr.mxu0 0.0
  %441 = vmatpush1.msra.mxu0 0.0
  %442 = vmatprep.subr.mxu0 0.0
  %443 = vmatpush1.msra.mxu0 0.0
  %444 = vmatprep.subr.mxu0 0.0
  %445 = vmatpush1.msra.mxu0 0.0
  %446 = vmatprep.subr.mxu0 0.0
  %447 = vmatpush1.msra.mxu0 0.0
  %448 = vmatprep.subr.mxu0 0.0
  %449 = vmatpush1.msra.mxu0 0.0
  %450 = vmatprep.subr.mxu0 0.0
  %451 = vmatpush1.msra.mxu0 0.0
  %452 = vmatprep.subr.mxu0 0.0
  %453 = vmatpush1.msra.mxu0 0.0
  %454 = vmatprep.subr.mxu0 0.0
  %455 = vmatpush1.msra.mxu0 0.0
  %456 = vmatprep.subr.mxu0 0.0
  %457 = vmatpush1.msra.mxu0 0.0
  %458 = vmatprep.subr.mxu0 0.0
  %459 = vmatpush1.msra.mxu0 0.0
  %460 = vmatprep.subr.mxu0 0.0
  %461 = vmatpush1.msra.mxu0 0.0
  %462 = vmatprep.subr.mxu0 0.0
  %463 = vmatpush1.msra.mxu0 0.0
  %464 = vmatprep.subr.mxu0 0.0
  %465 = vmatpush1.msra.mxu0 0.0
  %466 = vmatprep.subr.mxu0 0.0
  %467 = vmatpush1.msra.mxu0 0.0
  %468 = vmatprep.subr.mxu0 0.0
  %469 = vmatpush1.msra.mxu0 0.0
  %470 = vmatprep.subr.mxu0 0.0
  %471 = vmatpush1.msra.mxu0 0.0
  %472 = vmatprep.subr.mxu0 0.0
  %473 = vmatpush1.msra.mxu0 0.0
  %474 = vmatprep.mubr.f32.mxu0 0.0
  %475 = vmatmul.mubr.f32.gmra.mrb[0].mxu0 %v405
  %v476 = vpop.f32.mrb[0].mxu0
  %v477 = vadd.f32 0.0, %v476
  %v478 = vpop.f32.mrb[0].mxu0
  %479 = vmatprep.mubr.f32.mxu0 0.0
  %480 = vmatmul.mubr.f32.gmra.mrb[0].mxu0 %v408
  %v481 = vpop.f32.mrb[0].mxu0
  %v482 = vadd.f32 0.0, %v481
  %v483 = vpop.f32.mrb[0].mxu0
  %484 = vdwg.mxu0
  %v485 = vld [vmem:[%s7] sm:$0x1]
  %v487 = vlaneseq
  %v488 = vshrl.u32 %v487, 7
  %v489 = vsub.s32 0, %v488
  %v490 = vrot.slane %v485, %v489
  %492 = vmatprep.subr.mxu0 0.0
  %493 = vmatpush1.msra.mxu0 %v477
  %494 = vmatprep.subr.mxu0 0.0
  %495 = vmatpush1.msra.mxu0 %v482
  %496 = vmatprep.subr.mxu0 0.0
  %497 = vmatpush1.msra.mxu0 0.0
  %498 = vmatprep.subr.mxu0 0.0
  %499 = vmatpush1.msra.mxu0 0.0
  %500 = vmatprep.subr.mxu0 0.0
  %501 = vmatpush1.msra.mxu0 0.0
  %502 = vmatprep.subr.mxu0 0.0
  %503 = vmatpush1.msra.mxu0 0.0
  %504 = vmatprep.subr.mxu0 0.0
  %505 = vmatpush1.msra.mxu0 0.0
  %506 = vmatprep.subr.mxu0 0.0
  %507 = vmatpush1.msra.mxu0 0.0
  %508 = vmatprep.subr.mxu0 0.0
  %509 = vmatpush1.msra.mxu0 0.0
  %510 = vmatprep.subr.mxu0 0.0
  %511 = vmatpush1.msra.mxu0 0.0
  %512 = vmatprep.subr.mxu0 0.0
  %513 = vmatpush1.msra.mxu0 0.0
  %514 = vmatprep.subr.mxu0 0.0
  %515 = vmatpush1.msra.mxu0 0.0
  %516 = vmatprep.subr.mxu0 0.0
  %517 = vmatpush1.msra.mxu0 0.0
  %518 = vmatprep.subr.mxu0 0.0
  %519 = vmatpush1.msra.mxu0 0.0
  %520 = vmatprep.subr.mxu0 0.0
  %521 = vmatpush1.msra.mxu0 0.0
  %522 = vmatprep.subr.mxu0 0.0
  %523 = vmatpush1.msra.mxu0 0.0
  %524 = vmatprep.subr.mxu0 0.0
  %525 = vmatpush1.msra.mxu0 0.0
  %526 = vmatprep.subr.mxu0 0.0
  %527 = vmatpush1.msra.mxu0 0.0
  %528 = vmatprep.subr.mxu0 0.0
  %529 = vmatpush1.msra.mxu0 0.0
  %530 = vmatprep.subr.mxu0 0.0
  %531 = vmatpush1.msra.mxu0 0.0
  %532 = vmatprep.subr.mxu0 0.0
  %533 = vmatpush1.msra.mxu0 0.0
  %534 = vmatprep.subr.mxu0 0.0
  %535 = vmatpush1.msra.mxu0 0.0
  %536 = vmatprep.subr.mxu0 0.0
  %537 = vmatpush1.msra.mxu0 0.0
  %538 = vmatprep.subr.mxu0 0.0
  %539 = vmatpush1.msra.mxu0 0.0
  %540 = vmatprep.subr.mxu0 0.0
  %541 = vmatpush1.msra.mxu0 0.0
  %542 = vmatprep.subr.mxu0 0.0
  %543 = vmatpush1.msra.mxu0 0.0
  %544 = vmatprep.subr.mxu0 0.0
  %545 = vmatpush1.msra.mxu0 0.0
  %546 = vmatprep.subr.mxu0 0.0
  %547 = vmatpush1.msra.mxu0 0.0
  %548 = vmatprep.subr.mxu0 0.0
  %549 = vmatpush1.msra.mxu0 0.0
  %550 = vmatprep.subr.mxu0 0.0
  %551 = vmatpush1.msra.mxu0 0.0
  %552 = vmatprep.subr.mxu0 0.0
  %553 = vmatpush1.msra.mxu0 0.0
  %554 = vmatprep.subr.mxu0 0.0
  %555 = vmatpush1.msra.mxu0 0.0
  %556 = vmatprep.mubr.f32.mxu0 0.0
  %557 = vmatmul.mubr.f32.gmra.mrb[0].mxu0 %v148
  %v558 = vpop.f32.mrb[0].mxu0
  %v559 = vadd.f32 %v490, %v558
  %v560 = vpop.f32.mrb[0].mxu0
  %561 = vmatprep.mubr.f32.mxu0 0.0
  %562 = vmatmul.mubr.f32.gmra.mrb[0].mxu0 %v151
  %v563 = vpop.f32.mrb[0].mxu0
  %v564 = vadd.f32 %v490, %v563
  %v565 = vpop.f32.mrb[0].mxu0
  %566 = vdwg.mxu0
  %v567 = vtanh.pop %v559
  %v568 = vtanh.pop %v564
  %v569 = vld [vmem:[%s8] sm:$0xff]
  %v570 = vld [vmem:[%s8 + $0x8] sm:$0xff]
  %v571 = vld [vmem:[%s8 + $0x10] sm:$0xff]
  %v572 = vld [vmem:[%s8 + $0x18] sm:$0xff]
  %v574 = vsel %vm234, %v567, 0
  %v577 = vsel %vm234, %v568, 0
  %579 = vmatprep.subr.mxu0 0.0
  %580 = vmatpush1.msra.mxu0 %v569
  %581 = vmatprep.subr.mxu0 0.0
  %582 = vmatpush1.msra.mxu0 %v570
  %583 = vmatprep.subr.mxu0 0.0
  %584 = vmatpush1.msra.mxu0 %v571
  %585 = vmatprep.subr.mxu0 0.0
  %586 = vmatpush1.msra.mxu0 %v572
  %587 = vmatprep.subr.mxu0 0.0
  %588 = vmatpush1.msra.mxu0 0.0
  %589 = vmatprep.subr.mxu0 0.0
  %590 = vmatpush1.msra.mxu0 0.0
  %591 = vmatprep.subr.mxu0 0.0
  %592 = vmatpush1.msra.mxu0 0.0
  %593 = vmatprep.subr.mxu0 0.0
  %594 = vmatpush1.msra.mxu0 0.0
  %595 = vmatprep.subr.mxu0 0.0
  %596 = vmatpush1.msra.mxu0 0.0
  %597 = vmatprep.subr.mxu0 0.0
  %598 = vmatpush1.msra.mxu0 0.0
  %599 = vmatprep.subr.mxu0 0.0
  %600 = vmatpush1.msra.mxu0 0.0
  %601 = vmatprep.subr.mxu0 0.0
  %602 = vmatpush1.msra.mxu0 0.0
  %603 = vmatprep.subr.mxu0 0.0
  %604 = vmatpush1.msra.mxu0 0.0
  %605 = vmatprep.subr.mxu0 0.0
  %606 = vmatpush1.msra.mxu0 0.0
  %607 = vmatprep.subr.mxu0 0.0
  %608 = vmatpush1.msra.mxu0 0.0
  %609 = vmatprep.subr.mxu0 0.0
  %610 = vmatpush1.msra.mxu0 0.0
  %611 = vmatprep.subr.mxu0 0.0
  %612 = vmatpush1.msra.mxu0 0.0
  %613 = vmatprep.subr.mxu0 0.0
  %614 = vmatpush1.msra.mxu0 0.0
  %615 = vmatprep.subr.mxu0 0.0
  %616 = vmatpush1.msra.mxu0 0.0
  %617 = vmatprep.subr.mxu0 0.0
  %618 = vmatpush1.msra.mxu0 0.0
  %619 = vmatprep.subr.mxu0 0.0
  %620 = vmatpush1.msra.mxu0 0.0
  %621 = vmatprep.subr.mxu0 0.0
  %622 = vmatpush1.msra.mxu0 0.0
  %623 = vmatprep.subr.mxu0 0.0
  %624 = vmatpush1.msra.mxu0 0.0
  %625 = vmatprep.subr.mxu0 0.0
  %626 = vmatpush1.msra.mxu0 0.0
  %627 = vmatprep.subr.mxu0 0.0
  %628 = vmatpush1.msra.mxu0 0.0
  %629 = vmatprep.subr.mxu0 0.0
  %630 = vmatpush1.msra.mxu0 0.0
  %631 = vmatprep.subr.mxu0 0.0
  %632 = vmatpush1.msra.mxu0 0.0
  %633 = vmatprep.subr.mxu0 0.0
  %634 = vmatpush1.msra.mxu0 0.0
  %635 = vmatprep.subr.mxu0 0.0
  %636 = vmatpush1.msra.mxu0 0.0
  %637 = vmatprep.subr.mxu0 0.0
  %638 = vmatpush1.msra.mxu0 0.0
  %639 = vmatprep.subr.mxu0 0.0
  %640 = vmatpush1.msra.mxu0 0.0
  %641 = vmatprep.subr.mxu0 0.0
  %642 = vmatpush1.msra.mxu0 0.0
  %643 = vmatprep.mubr.f32.mxu0 0.0
  %644 = vmatmul.mubr.f32.gmra.mrb[0].mxu0 %v574
  %v645 = vpop.f32.mrb[0].mxu0
  %v646 = vadd.f32 0.0, %v645
  %v647 = vpop.f32.mrb[0].mxu0
  %648 = vmatprep.mubr.f32.mxu0 0.0
  %649 = vmatmul.mubr.f32.gmra.mrb[0].mxu0 %v577
  %v650 = vpop.f32.mrb[0].mxu0
  %v651 = vadd.f32 0.0, %v650
  %v652 = vpop.f32.mrb[0].mxu0
  %653 = vdwg.mxu0
  %v654 = vld [vmem:[%s9] sm:$0x1]
  %v656 = vlaneseq
  %v657 = vshrl.u32 %v656, 7
  %v658 = vsub.s32 0, %v657
  %v659 = vrot.slane %v654, %v658
  %661 = vmatprep.subr.mxu0 0.0
  %662 = vmatpush1.msra.mxu0 %v646
  %663 = vmatprep.subr.mxu0 0.0
  %664 = vmatpush1.msra.mxu0 %v651
  %665 = vmatprep.subr.mxu0 0.0
  %666 = vmatpush1.msra.mxu0 0.0
  %667 = vmatprep.subr.mxu0 0.0
  %668 = vmatpush1.msra.mxu0 0.0
  %669 = vmatprep.subr.mxu0 0.0
  %670 = vmatpush1.msra.mxu0 0.0
  %671 = vmatprep.subr.mxu0 0.0
  %672 = vmatpush1.msra.mxu0 0.0
  %673 = vmatprep.subr.mxu0 0.0
  %674 = vmatpush1.msra.mxu0 0.0
  %675 = vmatprep.subr.mxu0 0.0
  %676 = vmatpush1.msra.mxu0 0.0
  %677 = vmatprep.subr.mxu0 0.0
  %678 = vmatpush1.msra.mxu0 0.0
  %679 = vmatprep.subr.mxu0 0.0
  %680 = vmatpush1.msra.mxu0 0.0
  %681 = vmatprep.subr.mxu0 0.0
  %682 = vmatpush1.msra.mxu0 0.0
  %683 = vmatprep.subr.mxu0 0.0
  %684 = vmatpush1.msra.mxu0 0.0
  %685 = vmatprep.subr.mxu0 0.0
  %686 = vmatpush1.msra.mxu0 0.0
  %687 = vmatprep.subr.mxu0 0.0
  %688 = vmatpush1.msra.mxu0 0.0
  %689 = vmatprep.subr.mxu0 0.0
  %690 = vmatpush1.msra.mxu0 0.0
  %691 = vmatprep.subr.mxu0 0.0
  %692 = vmatpush1.msra.mxu0 0.0
  %693 = vmatprep.subr.mxu0 0.0
  %694 = vmatpush1.msra.mxu0 0.0
  %695 = vmatprep.subr.mxu0 0.0
  %696 = vmatpush1.msra.mxu0 0.0
  %697 = vmatprep.subr.mxu0 0.0
  %698 = vmatpush1.msra.mxu0 0.0
  %699 = vmatprep.subr.mxu0 0.0
  %700 = vmatpush1.msra.mxu0 0.0
  %701 = vmatprep.subr.mxu0 0.0
  %702 = vmatpush1.msra.mxu0 0.0
  %703 = vmatprep.subr.mxu0 0.0
  %704 = vmatpush1.msra.mxu0 0.0
  %705 = vmatprep.subr.mxu0 0.0
  %706 = vmatpush1.msra.mxu0 0.0
  %707 = vmatprep.subr.mxu0 0.0
  %708 = vmatpush1.msra.mxu0 0.0
  %709 = vmatprep.subr.mxu0 0.0
  %710 = vmatpush1.msra.mxu0 0.0
  %711 = vmatprep.subr.mxu0 0.0
  %712 = vmatpush1.msra.mxu0 0.0
  %713 = vmatprep.subr.mxu0 0.0
  %714 = vmatpush1.msra.mxu0 0.0
  %715 = vmatprep.subr.mxu0 0.0
  %716 = vmatpush1.msra.mxu0 0.0
  %717 = vmatprep.subr.mxu0 0.0
  %718 = vmatpush1.msra.mxu0 0.0
  %719 = vmatprep.subr.mxu0 0.0
  %720 = vmatpush1.msra.mxu0 0.0
  %721 = vmatprep.subr.mxu0 0.0
  %722 = vmatpush1.msra.mxu0 0.0
  %723 = vmatprep.subr.mxu0 0.0
  %724 = vmatpush1.msra.mxu0 0.0
  %725 = vmatprep.mubr.f32.mxu0 0.0
  %726 = vmatmul.mubr.f32.gmra.mrb[0].mxu0 %v148
  %v727 = vpop.f32.mrb[0].mxu0
  %v728 = vadd.f32 %v659, %v727
  %v729 = vpop.f32.mrb[0].mxu0
  %730 = vmatprep.mubr.f32.mxu0 0.0
  %731 = vmatmul.mubr.f32.gmra.mrb[0].mxu0 %v151
  %v732 = vpop.f32.mrb[0].mxu0
  %v733 = vadd.f32 %v659, %v732
  %v734 = vpop.f32.mrb[0].mxu0
  %735 = vdwg.mxu0
  %v736 = vtanh.pop %v728
  %v737 = vtanh.pop %v733
  %v738 = vld [vmem:[%s10] sm:$0xff]
  %v739 = vld [vmem:[%s10 + $0x8] sm:$0xff]
  %vm740 = vcmp.gt.f32.partialorder %v738, 0.0
  %vm741 = vcmp.gt.f32.partialorder %v739, 0.0
  %v742 = vsel %vm740, 1, 0
  %v743 = vsel %vm741, 1, 0
  %744 = vset.pattern.permute.xlu0 0
  %745 = vperm.xlu0 %744, %v742
  %v746 = vpop.permute.xlu0 %745
  %747 = vset.pattern.permute.xlu0 0
  %748 = vperm.xlu0 %747, %v743
  %v749 = vpop.permute.xlu0 %748
  %vm750 = vcmp.eq.s32.totalorder %v746, 1
  %vm751 = vcmp.eq.s32.totalorder %v749, 1
  %v752 = vsel %vm750, %v736, -1e+30
  %v753 = vsel %vm751, %v737, -1e+30
  %v754 = vsel %vm234, %v752, -inf
  %v755 = vsel %vm234, %v753, -inf
  %v756 = vmax.f32 %v754, %v755
  %v757 = vrot.slane %v756, 4
  %v758 = vmax.f32 %v756, %v757
  %v759 = vrot.slane %v758, 2
  %v760 = vmax.f32 %v758, %v759
  %v761 = vrot.slane %v760, 1
  %v762 = vmax.f32 %v760, %v761
  %763 = vset.pattern.permute.xlu0 1
  %764 = vperm.xlu0 %763, %v742
  %v765 = vpop.permute.xlu0 %764
  %766 = vset.pattern.permute.xlu0 1
  %767 = vperm.xlu0 %766, %v743
  %v768 = vpop.permute.xlu0 %767
  %vm769 = vcmp.eq.s32.totalorder %v765, 1
  %vm770 = vcmp.eq.s32.totalorder %v768, 1
  %v771 = vsel %vm769, %v736, -1e+30
  %v772 = vsel %vm770, %v737, -1e+30
  %v773 = vsel %vm234, %v771, -inf
  %v774 = vsel %vm234, %v772, -inf
  %v775 = vmax.f32 %v773, %v774
  %v776 = vrot.slane %v775, 4
  %v777 = vmax.f32 %v775, %v776
  %v778 = vrot.slane %v777, 2
  %v779 = vmax.f32 %v777, %v778
  %v780 = vrot.slane %v779, 1
  %v781 = vmax.f32 %v779, %v780
  %vm782 = vcmask 1040384
  %v783 = vsel %vm782, %v762, %v781
  %v784 = vld [vmem:[%s11] sm:$0x3]
  %v786 = vsel %vm146, %v784, 0
  %788 = vmatprep.subr.mxu0 0.0
  %789 = vmatpush1.msra.mxu0 %v736
  %790 = vmatprep.subr.mxu0 0.0
  %791 = vmatpush1.msra.mxu0 %v737
  %792 = vmatprep.subr.mxu0 0.0
  %793 = vmatpush1.msra.mxu0 0.0
  %794 = vmatprep.subr.mxu0 0.0
  %795 = vmatpush1.msra.mxu0 0.0
  %796 = vmatprep.subr.mxu0 0.0
  %797 = vmatpush1.msra.mxu0 0.0
  %798 = vmatprep.subr.mxu0 0.0
  %799 = vmatpush1.msra.mxu0 0.0
  %800 = vmatprep.subr.mxu0 0.0
  %801 = vmatpush1.msra.mxu0 0.0
  %802 = vmatprep.subr.mxu0 0.0
  %803 = vmatpush1.msra.mxu0 0.0
  %804 = vmatprep.subr.mxu0 0.0
  %805 = vmatpush1.msra.mxu0 0.0
  %806 = vmatprep.subr.mxu0 0.0
  %807 = vmatpush1.msra.mxu0 0.0
  %808 = vmatprep.subr.mxu0 0.0
  %809 = vmatpush1.msra.mxu0 0.0
  %810 = vmatprep.subr.mxu0 0.0
  %811 = vmatpush1.msra.mxu0 0.0
  %812 = vmatprep.subr.mxu0 0.0
  %813 = vmatpush1.msra.mxu0 0.0
  %814 = vmatprep.subr.mxu0 0.0
  %815 = vmatpush1.msra.mxu0 0.0
  %816 = vmatprep.subr.mxu0 0.0
  %817 = vmatpush1.msra.mxu0 0.0
  %818 = vmatprep.subr.mxu0 0.0
  %819 = vmatpush1.msra.mxu0 0.0
  %820 = vmatprep.subr.mxu0 0.0
  %821 = vmatpush1.msra.mxu0 0.0
  %822 = vmatprep.subr.mxu0 0.0
  %823 = vmatpush1.msra.mxu0 0.0
  %824 = vmatprep.subr.mxu0 0.0
  %825 = vmatpush1.msra.mxu0 0.0
  %826 = vmatprep.subr.mxu0 0.0
  %827 = vmatpush1.msra.mxu0 0.0
  %828 = vmatprep.subr.mxu0 0.0
  %829 = vmatpush1.msra.mxu0 0.0
  %830 = vmatprep.subr.mxu0 0.0
  %831 = vmatpush1.msra.mxu0 0.0
  %832 = vmatprep.subr.mxu0 0.0
  %833 = vmatpush1.msra.mxu0 0.0
  %834 = vmatprep.subr.mxu0 0.0
  %835 = vmatpush1.msra.mxu0 0.0
  %836 = vmatprep.subr.mxu0 0.0
  %837 = vmatpush1.msra.mxu0 0.0
  %838 = vmatprep.subr.mxu0 0.0
  %839 = vmatpush1.msra.mxu0 0.0
  %840 = vmatprep.subr.mxu0 0.0
  %841 = vmatpush1.msra.mxu0 0.0
  %842 = vmatprep.subr.mxu0 0.0
  %843 = vmatpush1.msra.mxu0 0.0
  %844 = vmatprep.subr.mxu0 0.0
  %845 = vmatpush1.msra.mxu0 0.0
  %846 = vmatprep.subr.mxu0 0.0
  %847 = vmatpush1.msra.mxu0 0.0
  %848 = vmatprep.subr.mxu0 0.0
  %849 = vmatpush1.msra.mxu0 0.0
  %850 = vmatprep.subr.mxu0 0.0
  %851 = vmatpush1.msra.mxu0 0.0
  %852 = vmatprep.mubr.f32.mxu0 0.0
  %853 = vmatmul.mubr.f32.gmra.mrb[0].mxu0 %v786
  %v854 = vpop.f32.mrb[0].mxu0
  %v855 = vadd.f32 0.0, %v854
  %v856 = vpop.f32.mrb[0].mxu0
  %857 = vdwg.mxu0
  %v858 = vld [vmem:[%s12] sm:$0xff]
  %v859 = vld [vmem:[%s12 + $0x8] sm:$0xff]
  %v860 = vld [vmem:[%s12 + $0x10] sm:$0xff]
  %v861 = vld [vmem:[%s12 + $0x18] sm:$0xff]
  %v862 = vld [vmem:[%s13] sm:$0xff]
  %v863 = vld [vmem:[%s13 + $0x8] sm:$0xff]
  %v864 = vld [vmem:[%s13 + $0x10] sm:$0xff]
  %v865 = vld [vmem:[%s13 + $0x18] sm:$0xff]
  %v867 = vsel %vm234, %v855, 0
  %869 = vmatprep.subr.mxu0 0.0
  %870 = vmatpush1.msra.mxu0 %v862
  %871 = vmatprep.subr.mxu0 0.0
  %872 = vmatpush1.msra.mxu0 %v863
  %873 = vmatprep.subr.mxu0 0.0
  %874 = vmatpush1.msra.mxu0 %v864
  %875 = vmatprep.subr.mxu0 0.0
  %876 = vmatpush1.msra.mxu0 %v865
  %877 = vmatprep.subr.mxu0 0.0
  %878 = vmatpush1.msra.mxu0 0.0
  %879 = vmatprep.subr.mxu0 0.0
  %880 = vmatpush1.msra.mxu0 0.0
  %881 = vmatprep.subr.mxu0 0.0
  %882 = vmatpush1.msra.mxu0 0.0
  %883 = vmatprep.subr.mxu0 0.0
  %884 = vmatpush1.msra.mxu0 0.0
  %885 = vmatprep.subr.mxu0 0.0
  %886 = vmatpush1.msra.mxu0 0.0
  %887 = vmatprep.subr.mxu0 0.0
  %888 = vmatpush1.msra.mxu0 0.0
  %889 = vmatprep.subr.mxu0 0.0
  %890 = vmatpush1.msra.mxu0 0.0
  %891 = vmatprep.subr.mxu0 0.0
  %892 = vmatpush1.msra.mxu0 0.0
  %893 = vmatprep.subr.mxu0 0.0
  %894 = vmatpush1.msra.mxu0 0.0
  %895 = vmatprep.subr.mxu0 0.0
  %896 = vmatpush1.msra.mxu0 0.0
  %897 = vmatprep.subr.mxu0 0.0
  %898 = vmatpush1.msra.mxu0 0.0
  %899 = vmatprep.subr.mxu0 0.0
  %900 = vmatpush1.msra.mxu0 0.0
  %901 = vmatprep.subr.mxu0 0.0
  %902 = vmatpush1.msra.mxu0 0.0
  %903 = vmatprep.subr.mxu0 0.0
  %904 = vmatpush1.msra.mxu0 0.0
  %905 = vmatprep.subr.mxu0 0.0
  %906 = vmatpush1.msra.mxu0 0.0
  %907 = vmatprep.subr.mxu0 0.0
  %908 = vmatpush1.msra.mxu0 0.0
  %909 = vmatprep.subr.mxu0 0.0
  %910 = vmatpush1.msra.mxu0 0.0
  %911 = vmatprep.subr.mxu0 0.0
  %912 = vmatpush1.msra.mxu0 0.0
  %913 = vmatprep.subr.mxu0 0.0
  %914 = vmatpush1.msra.mxu0 0.0
  %915 = vmatprep.subr.mxu0 0.0
  %916 = vmatpush1.msra.mxu0 0.0
  %917 = vmatprep.subr.mxu0 0.0
  %918 = vmatpush1.msra.mxu0 0.0
  %919 = vmatprep.subr.mxu0 0.0
  %920 = vmatpush1.msra.mxu0 0.0
  %921 = vmatprep.subr.mxu0 0.0
  %922 = vmatpush1.msra.mxu0 0.0
  %923 = vmatprep.subr.mxu0 0.0
  %924 = vmatpush1.msra.mxu0 0.0
  %925 = vmatprep.subr.mxu0 0.0
  %926 = vmatpush1.msra.mxu0 0.0
  %927 = vmatprep.subr.mxu0 0.0
  %928 = vmatpush1.msra.mxu0 0.0
  %929 = vmatprep.subr.mxu0 0.0
  %930 = vmatpush1.msra.mxu0 0.0
  %931 = vmatprep.subr.mxu0 0.0
  %932 = vmatpush1.msra.mxu0 0.0
  %933 = vmatprep.mubr.f32.mxu0 0.0
  %934 = vmatmul.mubr.f32.gmra.mrb[0].mxu0 %v867
  %v935 = vpop.f32.mrb[0].mxu0
  %v936 = vadd.f32 0.0, %v935
  %v937 = vpop.f32.mrb[0].mxu0
  %938 = vdwg.mxu0
  %v940 = vsel %vm234, %v783, 0
  %942 = vmatprep.subr.mxu0 0.0
  %943 = vmatpush1.msra.mxu0 %v858
  %944 = vmatprep.subr.mxu0 0.0
  %945 = vmatpush1.msra.mxu0 %v859
  %946 = vmatprep.subr.mxu0 0.0
  %947 = vmatpush1.msra.mxu0 %v860
  %948 = vmatprep.subr.mxu0 0.0
  %949 = vmatpush1.msra.mxu0 %v861
  %950 = vmatprep.subr.mxu0 0.0
  %951 = vmatpush1.msra.mxu0 0.0
  %952 = vmatprep.subr.mxu0 0.0
  %953 = vmatpush1.msra.mxu0 0.0
  %954 = vmatprep.subr.mxu0 0.0
  %955 = vmatpush1.msra.mxu0 0.0
  %956 = vmatprep.subr.mxu0 0.0
  %957 = vmatpush1.msra.mxu0 0.0
  %958 = vmatprep.subr.mxu0 0.0
  %959 = vmatpush1.msra.mxu0 0.0
  %960 = vmatprep.subr.mxu0 0.0
  %961 = vmatpush1.msra.mxu0 0.0
  %962 = vmatprep.subr.mxu0 0.0
  %963 = vmatpush1.msra.mxu0 0.0
  %964 = vmatprep.subr.mxu0 0.0
  %965 = vmatpush1.msra.mxu0 0.0
  %966 = vmatprep.subr.mxu0 0.0
  %967 = vmatpush1.msra.mxu0 0.0
  %968 = vmatprep.subr.mxu0 0.0
  %969 = vmatpush1.msra.mxu0 0.0
  %970 = vmatprep.subr.mxu0 0.0
  %971 = vmatpush1.msra.mxu0 0.0
  %972 = vmatprep.subr.mxu0 0.0
  %973 = vmatpush1.msra.mxu0 0.0
  %974 = vmatprep.subr.mxu0 0.0
  %975 = vmatpush1.msra.mxu0 0.0
  %976 = vmatprep.subr.mxu0 0.0
  %977 = vmatpush1.msra.mxu0 0.0
  %978 = vmatprep.subr.mxu0 0.0
  %979 = vmatpush1.msra.mxu0 0.0
  %980 = vmatprep.subr.mxu0 0.0
  %981 = vmatpush1.msra.mxu0 0.0
  %982 = vmatprep.subr.mxu0 0.0
  %983 = vmatpush1.msra.mxu0 0.0
  %984 = vmatprep.subr.mxu0 0.0
  %985 = vmatpush1.msra.mxu0 0.0
  %986 = vmatprep.subr.mxu0 0.0
  %987 = vmatpush1.msra.mxu0 0.0
  %988 = vmatprep.subr.mxu0 0.0
  %989 = vmatpush1.msra.mxu0 0.0
  %990 = vmatprep.subr.mxu0 0.0
  %991 = vmatpush1.msra.mxu0 0.0
  %992 = vmatprep.subr.mxu0 0.0
  %993 = vmatpush1.msra.mxu0 0.0
  %994 = vmatprep.subr.mxu0 0.0
  %995 = vmatpush1.msra.mxu0 0.0
  %996 = vmatprep.subr.mxu0 0.0
  %997 = vmatpush1.msra.mxu0 0.0
  %998 = vmatprep.subr.mxu0 0.0
  %999 = vmatpush1.msra.mxu0 0.0
  %1000 = vmatprep.subr.mxu0 0.0
  %1001 = vmatpush1.msra.mxu0 0.0
  %1002 = vmatprep.subr.mxu0 0.0
  %1003 = vmatpush1.msra.mxu0 0.0
  %1004 = vmatprep.subr.mxu0 0.0
  %1005 = vmatpush1.msra.mxu0 0.0
  %1006 = vmatprep.mubr.f32.mxu0 0.0
  %1007 = vmatmul.mubr.f32.gmra.mrb[0].mxu0 %v940
  %v1008 = vpop.f32.mrb[0].mxu0
  %v1009 = vadd.f32 %v936, %v1008
  %v1010 = vpop.f32.mrb[0].mxu0
  %1011 = vdwg.mxu0
  %v1012 = vld [vmem:[#allocation2] sm:$0x1]
  %v1014 = vlaneseq
  %v1015 = vshrl.u32 %v1014, 7
  %v1016 = vsub.s32 0, %v1015
  %v1017 = vrot.slane %v1012, %v1016
  %v1019 = vadd.f32 %v1009, %v1017
  %1021 = vset.pattern.permute.xlu0 0
  %1022 = vperm.xlu0 %1021, %v1019
  %v1023 = vpop.permute.xlu0 %1022
  %1025 = vst [vmem:[%s15] sm:$0x3] %v1023
  // Predicated region
  $region62: #{gcn_net_forward.1} parent=0 // pred_check
    _
  $region63: #{gcn_net_forward.1} parent=0 // pred_check_branch
    %1027 = sbr.rel (0) target = $region65
  $region64: #{gcn_net_forward.1} parent=0 // pred_region
    _
  $region65: #{gcn_net_forward.1} parent=0 // pred_fallthru
    _
  // Predicated region
  $region66: #{gcn_net_forward.1} parent=0 // pred_check
    _
  $region67: #{gcn_net_forward.1} parent=0 // pred_check_branch
    %1029 = sbr.rel (0) target = $region69
  $region68: #{gcn_net_forward.1} parent=0 // pred_region
    _
  $region69: #{gcn_net_forward.1} parent=0 // pred_fallthru
    _

</llo_original>
